<compile_context>
chip_gen: v7x
topology: tpu7x:2x2x1
jax: 0.10.0
libtpu: 0.0.40
codegen_flags: <defaults>
</compile_context>

<pallas_src>
import functools

import jax
import jax.numpy as jnp
from jax import lax
from jax.experimental import pallas as pl
from jax.experimental.pallas import tpu as pltpu


# ----------------------------- Fused Pallas kernel -----------------------------

def fused_encoder_kernel(p_ref, w_ref, gb_ref, wr_ref, o_ref, *scratch,
                         eps, T, TM):
    """Conv(im2col matmul) + BN(batch stats) + ReLU + MaxPool + residual block."""
    i = pl.program_id(0)

    # Conv3d as a single lane-dense matmul: (Cout, KP) @ (KP, TM) -> (Cout, TM),
    # bf16 operands, f32 accumulation on the MXU.
    tile = jnp.dot(w_ref[...], p_ref[...], preferred_element_type=jnp.float32)

    def epilogue(y):
        # y: (Cout, M) f32 conv output, channels in sublanes, positions in lanes.
        # BatchNorm3d training-mode batch stats per channel; centered variance.
        mean = jnp.mean(y, axis=1, keepdims=True)                    # (Cout, 1)
        yc = y - mean
        var = jnp.mean(yc * yc, axis=1, keepdims=True)               # (Cout, 1)
        g = gb_ref[:, 0:1]
        be = gb_ref[:, 1:2]
        brs = gb_ref[:, 2:3]
        y = jnp.maximum(yc * lax.rsqrt(var + eps) * g + be, 0.0)     # BN + ReLU

        # MaxPool3d 2x2x2 / stride 2: the M axis is ordered
        # (dp, hp, wp, n, d//2, h//2, w//2), so the 8 pool taps of every output
        # position live in 8 aligned lane-dense (Cout, M/8) slabs.
        MP = y.shape[1] // 8
        pooled = y[:, 0:MP]
        for k in range(1, 8):
            pooled = jnp.maximum(pooled, y[:, k * MP:(k + 1) * MP])

        # Residual 1x1x1 conv block (stand-in for the external ResNet backbone).
        r = jnp.dot(wr_ref[...], pooled, preferred_element_type=jnp.float32)
        o_ref[...] = jnp.maximum(pooled + r + brs, 0.0)

    if T == 1:
        # Single grid step: one MXU push + immediate epilogue, no scratch.
        epilogue(tile)
    else:
        acc_ref, = scratch                                  # flat (Cout, M) slab
        off = pl.multiple_of(i * TM, 128)
        acc_ref[:, pl.ds(off, TM)] = tile

        @pl.when(i == pl.num_programs(0) - 1)
        def _():
            epilogue(acc_ref[...])


# ------------------------------- Host wrapper ----------------------------------

def _im2col_pool_major(x_ndhwc, K, pad):
    """(K^3*Cin, M) patch matrix; M ordered (d%2, h%2, w%2, n, d//2, h//2, w//2)."""
    N, D, H, W, Cin = x_ndhwc.shape
    xp = jnp.pad(x_ndhwc, ((0, 0), (pad, pad), (pad, pad), (pad, pad), (0, 0)))
    taps = []
    for kd in range(K):
        for kh in range(K):
            for kw in range(K):
                taps.append(xp[:, kd:kd + D, kh:kh + H, kw:kw + W, :])
    pat = jnp.stack(taps, axis=4)                           # (N,D,H,W,K^3,Cin)
    KV = K * K * K * Cin
    pat = pat.reshape(N, D // 2, 2, H // 2, 2, W // 2, 2, KV)
    # Pool offsets (dp, hp, wp) outermost, then (n, d2, h2, w2).
    pat = pat.transpose(2, 4, 6, 0, 1, 3, 5, 7)             # (2,2,2,N,D2,H2,W2,KV)
    return pat.reshape(N * D * H * W, KV).T                 # (KV, M)


def seq2seq_encoder_forward(x_ncdhw, params):
    """PyTorch-equivalent forward. Input is NCDHW like the reference module."""
    w27, gamma, beta, wr, br = (params[k] for k in
                                ("w27", "gamma", "beta", "wr", "br"))
    # NOTE: the Conv3d bias is mathematically dead under training-mode BN
    # (cancelled by the mean subtraction), so it is not passed to the kernel.
    x = jnp.transpose(x_ncdhw, (0, 2, 3, 4, 1)).astype(jnp.float32)   # -> NDHWC
    N, D, H, W, Cin = x.shape
    K, pad, eps = 3, 1, 1e-5
    Cout = w27.shape[-1]
    assert D % 2 == 0 and H % 2 == 0 and W % 2 == 0

    KV = K * K * K * Cin                               # 108
    KP = ((KV + 127) // 128) * 128                     # contraction padded to lanes
    M = N * D * H * W                                  # conv output positions
    TM = next((t for t in (2048, 1024, 512, 256, 128) if M % t == 0), M)
    T = M // TM                                        # T == 1 at this size
    MP = M // 8                                        # pooled positions

    # Host-side layout plumbing: im2col in pool-major order, bf16 stream for the
    # dominant HBM traffic, channels-in-sublanes weights / per-channel params.
    patches_t = jnp.pad(_im2col_pool_major(x, K, pad),
                        ((0, KP - KV), (0, 0))).astype(jnp.bfloat16)   # (KP, M)
    w_t = jnp.pad(w27.reshape(KV, Cout),
                  ((0, KP - KV), (0, 0))).T.astype(jnp.bfloat16)       # (Cout, KP)
    gbb = jnp.concatenate([gamma.T, beta.T, br.T], axis=1)             # (Cout, 3)
    wr_t = wr.T                                                        # (Cout, Cout)

    scratch = [] if T == 1 else [pltpu.VMEM((Cout, M), jnp.float32)]

    out2d = pl.pallas_call(
        functools.partial(fused_encoder_kernel, eps=eps, T=T, TM=TM),
        out_shape=jax.ShapeDtypeStruct((Cout, MP), jnp.float32),
        grid_spec=pltpu.PrefetchScalarGridSpec(
            num_scalar_prefetch=0,
            grid=(T,),
            in_specs=[
                pl.BlockSpec((KP, TM), lambda i: (0, i)),      # patch tile (pipelined)
                pl.BlockSpec((Cout, KP), lambda i: (0, 0)),    # conv weight (resident)
                pl.BlockSpec((Cout, 3), lambda i: (0, 0)),     # gamma|beta|res bias
                pl.BlockSpec((Cout, Cout), lambda i: (0, 0)),  # resblock weight^T
            ],
            out_specs=pl.BlockSpec((Cout, MP), lambda i: (0, 0)),
            scratch_shapes=scratch,
        ),
        compiler_params=pltpu.CompilerParams(
            dimension_semantics=("arbitrary",),     # BN stats: global reduction
            vmem_limit_bytes=32 * 1024 * 1024,
        ),
    )(patches_t, w_t, gbb, wr_t)

    # (Cout, N*D2*H2*W2) -> NDHWC
    return out2d.reshape(Cout, N, D // 2, H // 2, W // 2).transpose(1, 2, 3, 4, 0)


# ---------------------------- Pure-JAX reference -------------------------------

def reference_forward(x_ncdhw, params, w_dhwio):
    b, gamma, beta, wr, br = (params[k] for k in ("b", "gamma", "beta", "wr", "br"))
    x = jnp.transpose(x_ncdhw, (0, 2, 3, 4, 1)).astype(jnp.float32)
    # Match the kernel's mixed-precision conv stream (bf16 operands, f32 accum);
    # everything downstream of the conv is f32 in both.
    xq = x.astype(jnp.bfloat16).astype(jnp.float32)
    wq = w_dhwio.astype(jnp.bfloat16).astype(jnp.float32)
    y = lax.conv_general_dilated(
        xq, wq, window_strides=(1, 1, 1),
        padding=((1, 1), (1, 1), (1, 1)),
        dimension_numbers=("NDHWC", "DHWIO", "NDHWC"),
        precision=lax.Precision.HIGHEST) + b           # bias kept: cancels in BN
    mean = jnp.mean(y, axis=(0, 1, 2, 3), keepdims=True)
    var = jnp.var(y, axis=(0, 1, 2, 3), keepdims=True)
    y = jnp.maximum((y - mean) * lax.rsqrt(var + 1e-5) * gamma + beta, 0.0)
    p = lax.reduce_window(y, -jnp.inf, lax.max,
                          window_dimensions=(1, 2, 2, 2, 1),
                          window_strides=(1, 2, 2, 2, 1), padding="VALID")
    flat = p.reshape(-1, p.shape[-1])
    r = jnp.maximum(flat + flat @ wr + br, 0.0)
    return r.reshape(p.shape)


# ------------------------------------ Main --------------------------------------

if __name__ == "__main__":
    key = jax.random.PRNGKey(0)
    k_x, k_w, k_b, k_g, k_be, k_wr, k_br = jax.random.split(key, 7)

    # Video clip NCDHW = (batch, channels, frames, H, W)
    N, Cin, D, H, W = 2, 4, 4, 16, 16
    Cout = 8

    x = jax.random.normal(k_x, (N, Cin, D, H, W), jnp.float32)

    # Deterministic synthetic parameters (not a checkpoint load).
    w_dhwio = 0.1 * jax.random.normal(k_w, (3, 3, 3, Cin, Cout), jnp.float32)
    params = {
        "w27": w_dhwio.reshape(27, Cin, Cout),
        "b": 0.1 * jax.random.normal(k_b, (1, Cout), jnp.float32),
        "gamma": 1.0 + 0.1 * jax.random.normal(k_g, (1, Cout), jnp.float32),
        "beta": 0.1 * jax.random.normal(k_be, (1, Cout), jnp.float32),
        "wr": 0.1 * jax.random.normal(k_wr, (Cout, Cout), jnp.float32),
        "br": 0.1 * jax.random.normal(k_br, (1, Cout), jnp.float32),
    }

    out = jax.block_until_ready(seq2seq_encoder_forward(x, params))
    ref = jax.block_until_ready(reference_forward(x, params, w_dhwio))

    assert out.shape == (N, D // 2, H // 2, W // 2, Cout), out.shape
    max_err = float(jnp.max(jnp.abs(out - ref)))
    assert jnp.allclose(out, ref, atol=1e-3, rtol=1e-3), max_err
    print("KERNEL_OK")
</pallas_src>

<mosaic_0001>
module attributes {stable_mosaic.version = 11 : i64} {
  func.func @fused_encoder_kernel(%arg0: i32, %arg1: memref<128x2048xbf16, #tpu.memory_space<vmem>>, %arg2: memref<8x128xbf16, #tpu.memory_space<vmem>>, %arg3: memref<8x3xf32, #tpu.memory_space<vmem>>, %arg4: memref<8x8xf32, #tpu.memory_space<vmem>>, %arg5: memref<8x256xf32, #tpu.memory_space<vmem>>) attributes {dimension_semantics = [#tpu.dimension_semantics<arbitrary>], iteration_bounds = array<i64: 1>, scalar_prefetch = 0 : i64, scratch_operands = 0 : i64, tpu.core_type = #tpu.core_type<tc>, window_params = [{transform_indices = @transform_0, window_bounds = array<i64: 128, 2048>}, {pipeline_mode = #tpu.pipeline_mode<synchronous>, transform_indices = @transform_1, window_bounds = array<i64: 8, 128>}, {pipeline_mode = #tpu.pipeline_mode<synchronous>, transform_indices = @transform_2, window_bounds = array<i64: 8, 3>}, {pipeline_mode = #tpu.pipeline_mode<synchronous>, transform_indices = @transform_3, window_bounds = array<i64: 8, 8>}, {pipeline_mode = #tpu.pipeline_mode<synchronous>, transform_indices = @transform_4, window_bounds = array<i64: 8, 256>}]} {
    %c0 = arith.constant 0 : index
    %c0_0 = arith.constant 0 : index
    %0 = vector.load %arg2[%c0, %c0_0] : memref<8x128xbf16, #tpu.memory_space<vmem>>, vector<8x128xbf16>
    %c0_1 = arith.constant 0 : index
    %c0_2 = arith.constant 0 : index
    %1 = vector.load %arg1[%c0_1, %c0_2] : memref<128x2048xbf16, #tpu.memory_space<vmem>>, vector<128x2048xbf16>
    %cst = arith.constant dense<0.000000e+00> : vector<8x2048xf32>
    %2 = tpu.matmul %0, %1, %cst {dimension_numbers = #tpu.dot_dimension_numbers<[1], [0], [0], [1], [0, 0, 1, 1], [], []>} : vector<8x128xbf16>, vector<128x2048xbf16>, vector<8x2048xf32> -> vector<8x2048xf32>
    %cst_3 = arith.constant dense<0.000000e+00> : vector<8xf32>
    %3 = vector.multi_reduction <add>, %2, %cst_3 [1] : vector<8x2048xf32> to vector<8xf32>
    %4 = vector.shape_cast %3 : vector<8xf32> to vector<8x1xf32>
    %cst_4 = arith.constant 2.048000e+03 : f32
    %5 = vector.broadcast %cst_4 : f32 to vector<8x1xf32>
    %6 = arith.divf %4, %5 : vector<8x1xf32>
    %7 = vector.broadcast %6 : vector<8x1xf32> to vector<8x2048xf32>
    %8 = arith.subf %2, %7 : vector<8x2048xf32>
    %9 = arith.mulf %8, %8 : vector<8x2048xf32>
    %cst_5 = arith.constant dense<0.000000e+00> : vector<8xf32>
    %10 = vector.multi_reduction <add>, %9, %cst_5 [1] : vector<8x2048xf32> to vector<8xf32>
    %11 = vector.shape_cast %10 : vector<8xf32> to vector<8x1xf32>
    %cst_6 = arith.constant 2.048000e+03 : f32
    %12 = vector.broadcast %cst_6 : f32 to vector<8x1xf32>
    %13 = arith.divf %11, %12 : vector<8x1xf32>
    %c0_7 = arith.constant 0 : index
    %c0_8 = arith.constant 0 : index
    %14 = vector.load %arg3[%c0_7, %c0_8] : memref<8x3xf32, #tpu.memory_space<vmem>>, vector<8x1xf32>
    %c0_9 = arith.constant 0 : index
    %c1 = arith.constant 1 : index
    %15 = vector.load %arg3[%c0_9, %c1] : memref<8x3xf32, #tpu.memory_space<vmem>>, vector<8x1xf32>
    %c0_10 = arith.constant 0 : index
    %c2 = arith.constant 2 : index
    %16 = vector.load %arg3[%c0_10, %c2] : memref<8x3xf32, #tpu.memory_space<vmem>>, vector<8x1xf32>
    %cst_11 = arith.constant 9.99999974E-6 : f32
    %17 = vector.broadcast %cst_11 : f32 to vector<8x1xf32>
    %18 = arith.addf %13, %17 : vector<8x1xf32>
    %19 = math.rsqrt %18 : vector<8x1xf32>
    %20 = vector.broadcast %19 : vector<8x1xf32> to vector<8x2048xf32>
    %21 = arith.mulf %8, %20 : vector<8x2048xf32>
    %22 = vector.broadcast %14 : vector<8x1xf32> to vector<8x2048xf32>
    %23 = arith.mulf %21, %22 : vector<8x2048xf32>
    %24 = vector.broadcast %15 : vector<8x1xf32> to vector<8x2048xf32>
    %25 = arith.addf %23, %24 : vector<8x2048xf32>
    %cst_12 = arith.constant 0.000000e+00 : f32
    %26 = vector.broadcast %cst_12 : f32 to vector<8x2048xf32>
    %27 = arith.maximumf %25, %26 : vector<8x2048xf32>
    %28 = vector.extract_strided_slice %27 {offsets = [0, 0], sizes = [8, 256], strides = [1, 1]} : vector<8x2048xf32> to vector<8x256xf32>
    %29 = vector.extract_strided_slice %27 {offsets = [0, 256], sizes = [8, 256], strides = [1, 1]} : vector<8x2048xf32> to vector<8x256xf32>
    %30 = arith.maximumf %28, %29 : vector<8x256xf32>
    %31 = vector.extract_strided_slice %27 {offsets = [0, 512], sizes = [8, 256], strides = [1, 1]} : vector<8x2048xf32> to vector<8x256xf32>
    %32 = arith.maximumf %30, %31 : vector<8x256xf32>
    %33 = vector.extract_strided_slice %27 {offsets = [0, 768], sizes = [8, 256], strides = [1, 1]} : vector<8x2048xf32> to vector<8x256xf32>
    %34 = arith.maximumf %32, %33 : vector<8x256xf32>
    %35 = vector.extract_strided_slice %27 {offsets = [0, 1024], sizes = [8, 256], strides = [1, 1]} : vector<8x2048xf32> to vector<8x256xf32>
    %36 = arith.maximumf %34, %35 : vector<8x256xf32>
    %37 = vector.extract_strided_slice %27 {offsets = [0, 1280], sizes = [8, 256], strides = [1, 1]} : vector<8x2048xf32> to vector<8x256xf32>
    %38 = arith.maximumf %36, %37 : vector<8x256xf32>
    %39 = vector.extract_strided_slice %27 {offsets = [0, 1536], sizes = [8, 256], strides = [1, 1]} : vector<8x2048xf32> to vector<8x256xf32>
    %40 = arith.maximumf %38, %39 : vector<8x256xf32>
    %41 = vector.extract_strided_slice %27 {offsets = [0, 1792], sizes = [8, 256], strides = [1, 1]} : vector<8x2048xf32> to vector<8x256xf32>
    %42 = arith.maximumf %40, %41 : vector<8x256xf32>
    %c0_13 = arith.constant 0 : index
    %c0_14 = arith.constant 0 : index
    %43 = vector.load %arg4[%c0_13, %c0_14] : memref<8x8xf32, #tpu.memory_space<vmem>>, vector<8x8xf32>
    %cst_15 = arith.constant dense<0.000000e+00> : vector<8x256xf32>
    %44 = tpu.matmul %43, %42, %cst_15 {dimension_numbers = #tpu.dot_dimension_numbers<[1], [0], [0], [1], [0, 0, 1, 1], [], []>} : vector<8x8xf32>, vector<8x256xf32>, vector<8x256xf32> -> vector<8x256xf32>
    %45 = arith.addf %42, %44 : vector<8x256xf32>
    %46 = vector.broadcast %16 : vector<8x1xf32> to vector<8x256xf32>
    %47 = arith.addf %45, %46 : vector<8x256xf32>
    %cst_16 = arith.constant 0.000000e+00 : f32
    %48 = vector.broadcast %cst_16 : f32 to vector<8x256xf32>
    %49 = arith.maximumf %47, %48 : vector<8x256xf32>
    %c0_17 = arith.constant 0 : index
    %c0_18 = arith.constant 0 : index
    %50 = vector.load %arg5[%c0_17, %c0_18] : memref<8x256xf32, #tpu.memory_space<vmem>>, vector<8x256xf32>
    tpu.vector_store %arg5[%c0_17, %c0_18], %49 {strides = array<i32>} : memref<8x256xf32, #tpu.memory_space<vmem>>, vector<8x256xf32>,
    return
  }
  func.func @transform_0(%arg0: i32) -> (i32, i32) {
    %c0_i32 = arith.constant 0 : i32
    %c0_i32_0 = arith.constant 0 : i32
    return %c0_i32, %arg0 : i32, i32
  }
  func.func @transform_1(%arg0: i32) -> (i32, i32) {
    %c0_i32 = arith.constant 0 : i32
    %c0_i32_0 = arith.constant 0 : i32
    %c0_i32_1 = arith.constant 0 : i32
    return %c0_i32, %c0_i32_0 : i32, i32
  }
  func.func @transform_2(%arg0: i32) -> (i32, i32) {
    %c0_i32 = arith.constant 0 : i32
    %c0_i32_0 = arith.constant 0 : i32
    %c0_i32_1 = arith.constant 0 : i32
    return %c0_i32, %c0_i32_0 : i32, i32
  }
  func.func @transform_3(%arg0: i32) -> (i32, i32) {
    %c0_i32 = arith.constant 0 : i32
    %c0_i32_0 = arith.constant 0 : i32
    %c0_i32_1 = arith.constant 0 : i32
    return %c0_i32, %c0_i32_0 : i32, i32
  }
  func.func @transform_4(%arg0: i32) -> (i32, i32) {
    %c0_i32 = arith.constant 0 : i32
    %c0_i32_0 = arith.constant 0 : i32
    %c0_i32_1 = arith.constant 0 : i32
    return %c0_i32, %c0_i32_0 : i32, i32
  }
}

</mosaic_0001>

<llo_original>
// kernel: tpu_custom_call.1
$region0: #{tpu_custom_call.1}
  #allocation0 [shape = 'u32[]', space=smem, size = 0x4, offset = 0x4, fixed_abs, tag = 'smem constant byte address 0x4 - core index']
  #allocation1 [shape = 'u32[144,128]{1,0:T(1,128)}', space=vmem, size = 0x12000, scoped, tag = 'internal scratch']
  %s0 = inlined_call_operand.hbm [shape: bf16[128,2048], index: 0, kind: input, shape index: {}]
  %s1 = inlined_call_operand.vmem [shape: bf16[8,128], index: 1, kind: input, shape index: {}]
  %s2 = inlined_call_operand.vmem [shape: f32[8,3], index: 2, kind: input, shape index: {}]
  %s3 = inlined_call_operand.vmem [shape: f32[8,8], index: 3, kind: input, shape index: {}]
  %s4 = inlined_call_operand.hbm [shape: f32[8,256], index: 4, kind: output, shape index: {}]
  %s5 = sld [smem:[#allocation0]]
  $region30: #{tpu_custom_call.1} parent=0
    _
  %s7 = ssub.s32 1, %s5
  %s8 = scalar_select 0, %s7, %s5
  $region1: #{tpu_custom_call.1} parent=0
    #allocation2 [shape = 'u8[524288]{0}', space=vmem, size = 0x80000, scoped, tag = 'input window, operand 0, single buffered']
    #allocation3 [shape = 's32[1]{0}', space=sflag, size = 0x4, scoped, tag = 'scoped memory for tpu_custom_call.1']
    #allocation4 [shape = 's32[1]{0}', space=sflag, size = 0x4, scoped, tag = 'scoped memory for tpu_custom_call.1']
    #allocation5 [shape = 'u8[8192]{0}', space=vmem, size = 0x2000, scoped, tag = 'output window, operand 0, single buffered']
    %9 = vsyncpa [#allocation3], 0
    %10 = vsyncpa [#allocation4], 0
    // Predicated region
    $region2: #{tpu_custom_call.1} parent=1 // pred_check
      _
    $region3: #{tpu_custom_call.1} parent=1 // pred_check_branch
      %12 = sbr.rel (0) target = $region5
    $region4: #{tpu_custom_call.1} parent=1 // pred_region
      %s14 = ssub.s32 16384, 16384
      %15 = vsyncadd [#allocation3], %s14
      %s16 = sshll.u32 [#allocation2], 4
      %s17 = int_to_ptr.vmem [resolvable:$true] %s16
      %22 = dma.hbm_to_vmem [thread:$0]  %s0, 16384, %s17, [#allocation3], 1024, 1024, 64
    $region5: #{tpu_custom_call.1} parent=1 // pred_fallthru
      _
    // Predicated region
    $region6: #{tpu_custom_call.1} parent=1 // pred_check
      _
    $region7: #{tpu_custom_call.1} parent=1 // pred_check_branch
      %24 = sbr.rel (0) target = $region9
    $region8: #{tpu_custom_call.1} parent=1 // pred_region
      _
    $region9: #{tpu_custom_call.1} parent=1 // pred_fallthru
      _
    // Predicated region
    $region10: #{tpu_custom_call.1} parent=1 // pred_check
      _
    $region11: #{tpu_custom_call.1} parent=1 // pred_check_branch
      %26 = sbr.rel (0) target = $region13
    $region12: #{tpu_custom_call.1} parent=1 // pred_region
      _
    $region13: #{tpu_custom_call.1} parent=1 // pred_fallthru
      _
    // Predicated region
    $region14: #{tpu_custom_call.1} parent=1 // pred_check
      _
    $region15: #{tpu_custom_call.1} parent=1 // pred_check_branch
      %28 = sbr.rel (0) target = $region17
    $region16: #{tpu_custom_call.1} parent=1 // pred_region
      _
    $region17: #{tpu_custom_call.1} parent=1 // pred_fallthru
      _
    // Predicated region
    $region18: #{tpu_custom_call.1} parent=1 // pred_check
      _
    $region19: #{tpu_custom_call.1} parent=1 // pred_check_branch
      %30 = sbr.rel (0) target = $region21
    $region20: #{tpu_custom_call.1} parent=1 // pred_region
      %31 = dma.done [#allocation3], 16384
    $region21: #{tpu_custom_call.1} parent=1 // pred_fallthru
      _
    %v33 = vld [vmem:[%s1] sm:$0xf]
    %v34 = vld [vmem:[#allocation2] sm:$0xff]
    %v35 = vld [vmem:[#allocation2 + $0x8] sm:$0xff]
    %v36 = vld [vmem:[#allocation2 + $0x10] sm:$0xff]
    %v37 = vld [vmem:[#allocation2 + $0x18] sm:$0xff]
    %v38 = vld [vmem:[#allocation2 + $0x20] sm:$0xff]
    %v39 = vld [vmem:[#allocation2 + $0x28] sm:$0xff]
    %v40 = vld [vmem:[#allocation2 + $0x30] sm:$0xff]
    %v41 = vld [vmem:[#allocation2 + $0x38] sm:$0xff]
    %v42 = vld [vmem:[#allocation2 + $0x40] sm:$0xff]
    %v43 = vld [vmem:[#allocation2 + $0x48] sm:$0xff]
    %v44 = vld [vmem:[#allocation2 + $0x50] sm:$0xff]
    %v45 = vld [vmem:[#allocation2 + $0x58] sm:$0xff]
    %v46 = vld [vmem:[#allocation2 + $0x60] sm:$0xff]
    %v47 = vld [vmem:[#allocation2 + $0x68] sm:$0xff]
    %v48 = vld [vmem:[#allocation2 + $0x70] sm:$0xff]
    %v49 = vld [vmem:[#allocation2 + $0x78] sm:$0xff]
    %v50 = vld [vmem:[#allocation2 + $0x80] sm:$0xff]
    %v51 = vld [vmem:[#allocation2 + $0x88] sm:$0xff]
    %v52 = vld [vmem:[#allocation2 + $0x90] sm:$0xff]
    %v53 = vld [vmem:[#allocation2 + $0x98] sm:$0xff]
    %v54 = vld [vmem:[#allocation2 + $0xa0] sm:$0xff]
    %v55 = vld [vmem:[#allocation2 + $0xa8] sm:$0xff]
    %v56 = vld [vmem:[#allocation2 + $0xb0] sm:$0xff]
    %v57 = vld [vmem:[#allocation2 + $0xb8] sm:$0xff]
    %v58 = vld [vmem:[#allocation2 + $0xc0] sm:$0xff]
    %v59 = vld [vmem:[#allocation2 + $0xc8] sm:$0xff]
    %v60 = vld [vmem:[#allocation2 + $0xd0] sm:$0xff]
    %v61 = vld [vmem:[#allocation2 + $0xd8] sm:$0xff]
    %v62 = vld [vmem:[#allocation2 + $0xe0] sm:$0xff]
    %v63 = vld [vmem:[#allocation2 + $0xe8] sm:$0xff]
    %v64 = vld [vmem:[#allocation2 + $0xf0] sm:$0xff]
    %v65 = vld [vmem:[#allocation2 + $0xf8] sm:$0xff]
    %v66 = vld [vmem:[#allocation2 + $0x100] sm:$0xff]
    %v67 = vld [vmem:[#allocation2 + $0x108] sm:$0xff]
    %v68 = vld [vmem:[#allocation2 + $0x110] sm:$0xff]
    %v69 = vld [vmem:[#allocation2 + $0x118] sm:$0xff]
    %v70 = vld [vmem:[#allocation2 + $0x120] sm:$0xff]
    %v71 = vld [vmem:[#allocation2 + $0x128] sm:$0xff]
    %v72 = vld [vmem:[#allocation2 + $0x130] sm:$0xff]
    %v73 = vld [vmem:[#allocation2 + $0x138] sm:$0xff]
    %v74 = vld [vmem:[#allocation2 + $0x140] sm:$0xff]
    %v75 = vld [vmem:[#allocation2 + $0x148] sm:$0xff]
    %v76 = vld [vmem:[#allocation2 + $0x150] sm:$0xff]
    %v77 = vld [vmem:[#allocation2 + $0x158] sm:$0xff]
    %v78 = vld [vmem:[#allocation2 + $0x160] sm:$0xff]
    %v79 = vld [vmem:[#allocation2 + $0x168] sm:$0xff]
    %v80 = vld [vmem:[#allocation2 + $0x170] sm:$0xff]
    %v81 = vld [vmem:[#allocation2 + $0x178] sm:$0xff]
    %v82 = vld [vmem:[#allocation2 + $0x180] sm:$0xff]
    %v83 = vld [vmem:[#allocation2 + $0x188] sm:$0xff]
    %v84 = vld [vmem:[#allocation2 + $0x190] sm:$0xff]
    %v85 = vld [vmem:[#allocation2 + $0x198] sm:$0xff]
    %v86 = vld [vmem:[#allocation2 + $0x1a0] sm:$0xff]
    %v87 = vld [vmem:[#allocation2 + $0x1a8] sm:$0xff]
    %v88 = vld [vmem:[#allocation2 + $0x1b0] sm:$0xff]
    %v89 = vld [vmem:[#allocation2 + $0x1b8] sm:$0xff]
    %v90 = vld [vmem:[#allocation2 + $0x1c0] sm:$0xff]
    %v91 = vld [vmem:[#allocation2 + $0x1c8] sm:$0xff]
    %v92 = vld [vmem:[#allocation2 + $0x1d0] sm:$0xff]
    %v93 = vld [vmem:[#allocation2 + $0x1d8] sm:$0xff]
    %v94 = vld [vmem:[#allocation2 + $0x1e0] sm:$0xff]
    %v95 = vld [vmem:[#allocation2 + $0x1e8] sm:$0xff]
    %v96 = vld [vmem:[#allocation2 + $0x1f0] sm:$0xff]
    %v97 = vld [vmem:[#allocation2 + $0x1f8] sm:$0xff]
    %v98 = vld [vmem:[#allocation2 + $0x200] sm:$0xff]
    %v99 = vld [vmem:[#allocation2 + $0x208] sm:$0xff]
    %v100 = vld [vmem:[#allocation2 + $0x210] sm:$0xff]
    %v101 = vld [vmem:[#allocation2 + $0x218] sm:$0xff]
    %v102 = vld [vmem:[#allocation2 + $0x220] sm:$0xff]
    %v103 = vld [vmem:[#allocation2 + $0x228] sm:$0xff]
    %v104 = vld [vmem:[#allocation2 + $0x230] sm:$0xff]
    %v105 = vld [vmem:[#allocation2 + $0x238] sm:$0xff]
    %v106 = vld [vmem:[#allocation2 + $0x240] sm:$0xff]
    %v107 = vld [vmem:[#allocation2 + $0x248] sm:$0xff]
    %v108 = vld [vmem:[#allocation2 + $0x250] sm:$0xff]
    %v109 = vld [vmem:[#allocation2 + $0x258] sm:$0xff]
    %v110 = vld [vmem:[#allocation2 + $0x260] sm:$0xff]
    %v111 = vld [vmem:[#allocation2 + $0x268] sm:$0xff]
    %v112 = vld [vmem:[#allocation2 + $0x270] sm:$0xff]
    %v113 = vld [vmem:[#allocation2 + $0x278] sm:$0xff]
    %v114 = vld [vmem:[#allocation2 + $0x280] sm:$0xff]
    %v115 = vld [vmem:[#allocation2 + $0x288] sm:$0xff]
    %v116 = vld [vmem:[#allocation2 + $0x290] sm:$0xff]
    %v117 = vld [vmem:[#allocation2 + $0x298] sm:$0xff]
    %v118 = vld [vmem:[#allocation2 + $0x2a0] sm:$0xff]
    %v119 = vld [vmem:[#allocation2 + $0x2a8] sm:$0xff]
    %v120 = vld [vmem:[#allocation2 + $0x2b0] sm:$0xff]
    %v121 = vld [vmem:[#allocation2 + $0x2b8] sm:$0xff]
    %v122 = vld [vmem:[#allocation2 + $0x2c0] sm:$0xff]
    %v123 = vld [vmem:[#allocation2 + $0x2c8] sm:$0xff]
    %v124 = vld [vmem:[#allocation2 + $0x2d0] sm:$0xff]
    %v125 = vld [vmem:[#allocation2 + $0x2d8] sm:$0xff]
    %v126 = vld [vmem:[#allocation2 + $0x2e0] sm:$0xff]
    %v127 = vld [vmem:[#allocation2 + $0x2e8] sm:$0xff]
    %v128 = vld [vmem:[#allocation2 + $0x2f0] sm:$0xff]
    %v129 = vld [vmem:[#allocation2 + $0x2f8] sm:$0xff]
    %v130 = vld [vmem:[#allocation2 + $0x300] sm:$0xff]
    %v131 = vld [vmem:[#allocation2 + $0x308] sm:$0xff]
    %v132 = vld [vmem:[#allocation2 + $0x310] sm:$0xff]
    %v133 = vld [vmem:[#allocation2 + $0x318] sm:$0xff]
    %v134 = vld [vmem:[#allocation2 + $0x320] sm:$0xff]
    %v135 = vld [vmem:[#allocation2 + $0x328] sm:$0xff]
    %v136 = vld [vmem:[#allocation2 + $0x330] sm:$0xff]
    %v137 = vld [vmem:[#allocation2 + $0x338] sm:$0xff]
    %v138 = vld [vmem:[#allocation2 + $0x340] sm:$0xff]
    %v139 = vld [vmem:[#allocation2 + $0x348] sm:$0xff]
    %v140 = vld [vmem:[#allocation2 + $0x350] sm:$0xff]
    %v141 = vld [vmem:[#allocation2 + $0x358] sm:$0xff]
    %v142 = vld [vmem:[#allocation2 + $0x360] sm:$0xff]
    %v143 = vld [vmem:[#allocation2 + $0x368] sm:$0xff]
    %v144 = vld [vmem:[#allocation2 + $0x370] sm:$0xff]
    %v145 = vld [vmem:[#allocation2 + $0x378] sm:$0xff]
    %v146 = vld [vmem:[#allocation2 + $0x380] sm:$0xff]
    %v147 = vld [vmem:[#allocation2 + $0x388] sm:$0xff]
    %v148 = vld [vmem:[#allocation2 + $0x390] sm:$0xff]
    %v149 = vld [vmem:[#allocation2 + $0x398] sm:$0xff]
    %v150 = vld [vmem:[#allocation2 + $0x3a0] sm:$0xff]
    %v151 = vld [vmem:[#allocation2 + $0x3a8] sm:$0xff]
    %v152 = vld [vmem:[#allocation2 + $0x3b0] sm:$0xff]
    %v153 = vld [vmem:[#allocation2 + $0x3b8] sm:$0xff]
    %v154 = vld [vmem:[#allocation2 + $0x3c0] sm:$0xff]
    %v155 = vld [vmem:[#allocation2 + $0x3c8] sm:$0xff]
    %v156 = vld [vmem:[#allocation2 + $0x3d0] sm:$0xff]
    %v157 = vld [vmem:[#allocation2 + $0x3d8] sm:$0xff]
    %v158 = vld [vmem:[#allocation2 + $0x3e0] sm:$0xff]
    %v159 = vld [vmem:[#allocation2 + $0x3e8] sm:$0xff]
    %v160 = vld [vmem:[#allocation2 + $0x3f0] sm:$0xff]
    %v161 = vld [vmem:[#allocation2 + $0x3f8] sm:$0xff]
    %v290 = vunpack.c.l.b16 %v34
    %v291 = vunpack.c.h.b16 %v34
    %v292 = vunpack.c.l.b16 %v35
    %v293 = vunpack.c.h.b16 %v35
    %v294 = vunpack.c.l.b16 %v36
    %v295 = vunpack.c.h.b16 %v36
    %v296 = vunpack.c.l.b16 %v37
    %v297 = vunpack.c.h.b16 %v37
    %v298 = vunpack.c.l.b16 %v38
    %v299 = vunpack.c.h.b16 %v38
    %v300 = vunpack.c.l.b16 %v39
    %v301 = vunpack.c.h.b16 %v39
    %v302 = vunpack.c.l.b16 %v40
    %v303 = vunpack.c.h.b16 %v40
    %v304 = vunpack.c.l.b16 %v41
    %v305 = vunpack.c.h.b16 %v41
    %v306 = vunpack.c.l.b16 %v42
    %v307 = vunpack.c.h.b16 %v42
    %v308 = vunpack.c.l.b16 %v43
    %v309 = vunpack.c.h.b16 %v43
    %v310 = vunpack.c.l.b16 %v44
    %v311 = vunpack.c.h.b16 %v44
    %v312 = vunpack.c.l.b16 %v45
    %v313 = vunpack.c.h.b16 %v45
    %v314 = vunpack.c.l.b16 %v46
    %v315 = vunpack.c.h.b16 %v46
    %v316 = vunpack.c.l.b16 %v47
    %v317 = vunpack.c.h.b16 %v47
    %v318 = vunpack.c.l.b16 %v48
    %v319 = vunpack.c.h.b16 %v48
    %v320 = vunpack.c.l.b16 %v49
    %v321 = vunpack.c.h.b16 %v49
    %v322 = vunpack.c.l.b16 %v50
    %v323 = vunpack.c.h.b16 %v50
    %v324 = vunpack.c.l.b16 %v51
    %v325 = vunpack.c.h.b16 %v51
    %v326 = vunpack.c.l.b16 %v52
    %v327 = vunpack.c.h.b16 %v52
    %v328 = vunpack.c.l.b16 %v53
    %v329 = vunpack.c.h.b16 %v53
    %v330 = vunpack.c.l.b16 %v54
    %v331 = vunpack.c.h.b16 %v54
    %v332 = vunpack.c.l.b16 %v55
    %v333 = vunpack.c.h.b16 %v55
    %v334 = vunpack.c.l.b16 %v56
    %v335 = vunpack.c.h.b16 %v56
    %v336 = vunpack.c.l.b16 %v57
    %v337 = vunpack.c.h.b16 %v57
    %v338 = vunpack.c.l.b16 %v58
    %v339 = vunpack.c.h.b16 %v58
    %v340 = vunpack.c.l.b16 %v59
    %v341 = vunpack.c.h.b16 %v59
    %v342 = vunpack.c.l.b16 %v60
    %v343 = vunpack.c.h.b16 %v60
    %v344 = vunpack.c.l.b16 %v61
    %v345 = vunpack.c.h.b16 %v61
    %v346 = vunpack.c.l.b16 %v62
    %v347 = vunpack.c.h.b16 %v62
    %v348 = vunpack.c.l.b16 %v63
    %v349 = vunpack.c.h.b16 %v63
    %v350 = vunpack.c.l.b16 %v64
    %v351 = vunpack.c.h.b16 %v64
    %v352 = vunpack.c.l.b16 %v65
    %v353 = vunpack.c.h.b16 %v65
    %v354 = vunpack.c.l.b16 %v66
    %v355 = vunpack.c.h.b16 %v66
    %v356 = vunpack.c.l.b16 %v67
    %v357 = vunpack.c.h.b16 %v67
    %v358 = vunpack.c.l.b16 %v68
    %v359 = vunpack.c.h.b16 %v68
    %v360 = vunpack.c.l.b16 %v69
    %v361 = vunpack.c.h.b16 %v69
    %v362 = vunpack.c.l.b16 %v70
    %v363 = vunpack.c.h.b16 %v70
    %v364 = vunpack.c.l.b16 %v71
    %v365 = vunpack.c.h.b16 %v71
    %v366 = vunpack.c.l.b16 %v72
    %v367 = vunpack.c.h.b16 %v72
    %v368 = vunpack.c.l.b16 %v73
    %v369 = vunpack.c.h.b16 %v73
    %v370 = vunpack.c.l.b16 %v74
    %v371 = vunpack.c.h.b16 %v74
    %v372 = vunpack.c.l.b16 %v75
    %v373 = vunpack.c.h.b16 %v75
    %v374 = vunpack.c.l.b16 %v76
    %v375 = vunpack.c.h.b16 %v76
    %v376 = vunpack.c.l.b16 %v77
    %v377 = vunpack.c.h.b16 %v77
    %v378 = vunpack.c.l.b16 %v78
    %v379 = vunpack.c.h.b16 %v78
    %v380 = vunpack.c.l.b16 %v79
    %v381 = vunpack.c.h.b16 %v79
    %v382 = vunpack.c.l.b16 %v80
    %v383 = vunpack.c.h.b16 %v80
    %v384 = vunpack.c.l.b16 %v81
    %v385 = vunpack.c.h.b16 %v81
    %v386 = vunpack.c.l.b16 %v82
    %v387 = vunpack.c.h.b16 %v82
    %v388 = vunpack.c.l.b16 %v83
    %v389 = vunpack.c.h.b16 %v83
    %v390 = vunpack.c.l.b16 %v84
    %v391 = vunpack.c.h.b16 %v84
    %v392 = vunpack.c.l.b16 %v85
    %v393 = vunpack.c.h.b16 %v85
    %v394 = vunpack.c.l.b16 %v86
    %v395 = vunpack.c.h.b16 %v86
    %v396 = vunpack.c.l.b16 %v87
    %v397 = vunpack.c.h.b16 %v87
    %v398 = vunpack.c.l.b16 %v88
    %v399 = vunpack.c.h.b16 %v88
    %v400 = vunpack.c.l.b16 %v89
    %v401 = vunpack.c.h.b16 %v89
    %v402 = vunpack.c.l.b16 %v90
    %v403 = vunpack.c.h.b16 %v90
    %v404 = vunpack.c.l.b16 %v91
    %v405 = vunpack.c.h.b16 %v91
    %v406 = vunpack.c.l.b16 %v92
    %v407 = vunpack.c.h.b16 %v92
    %v408 = vunpack.c.l.b16 %v93
    %v409 = vunpack.c.h.b16 %v93
    %v410 = vunpack.c.l.b16 %v94
    %v411 = vunpack.c.h.b16 %v94
    %v412 = vunpack.c.l.b16 %v95
    %v413 = vunpack.c.h.b16 %v95
    %v414 = vunpack.c.l.b16 %v96
    %v415 = vunpack.c.h.b16 %v96
    %v416 = vunpack.c.l.b16 %v97
    %v417 = vunpack.c.h.b16 %v97
    %v418 = vunpack.c.l.b16 %v98
    %v419 = vunpack.c.h.b16 %v98
    %v420 = vunpack.c.l.b16 %v99
    %v421 = vunpack.c.h.b16 %v99
    %v422 = vunpack.c.l.b16 %v100
    %v423 = vunpack.c.h.b16 %v100
    %v424 = vunpack.c.l.b16 %v101
    %v425 = vunpack.c.h.b16 %v101
    %v426 = vunpack.c.l.b16 %v102
    %v427 = vunpack.c.h.b16 %v102
    %v428 = vunpack.c.l.b16 %v103
    %v429 = vunpack.c.h.b16 %v103
    %v430 = vunpack.c.l.b16 %v104
    %v431 = vunpack.c.h.b16 %v104
    %v432 = vunpack.c.l.b16 %v105
    %v433 = vunpack.c.h.b16 %v105
    %v434 = vunpack.c.l.b16 %v106
    %v435 = vunpack.c.h.b16 %v106
    %v436 = vunpack.c.l.b16 %v107
    %v437 = vunpack.c.h.b16 %v107
    %v438 = vunpack.c.l.b16 %v108
    %v439 = vunpack.c.h.b16 %v108
    %v440 = vunpack.c.l.b16 %v109
    %v441 = vunpack.c.h.b16 %v109
    %v442 = vunpack.c.l.b16 %v110
    %v443 = vunpack.c.h.b16 %v110
    %v444 = vunpack.c.l.b16 %v111
    %v445 = vunpack.c.h.b16 %v111
    %v446 = vunpack.c.l.b16 %v112
    %v447 = vunpack.c.h.b16 %v112
    %v448 = vunpack.c.l.b16 %v113
    %v449 = vunpack.c.h.b16 %v113
    %v450 = vunpack.c.l.b16 %v114
    %v451 = vunpack.c.h.b16 %v114
    %v452 = vunpack.c.l.b16 %v115
    %v453 = vunpack.c.h.b16 %v115
    %v454 = vunpack.c.l.b16 %v116
    %v455 = vunpack.c.h.b16 %v116
    %v456 = vunpack.c.l.b16 %v117
    %v457 = vunpack.c.h.b16 %v117
    %v458 = vunpack.c.l.b16 %v118
    %v459 = vunpack.c.h.b16 %v118
    %v460 = vunpack.c.l.b16 %v119
    %v461 = vunpack.c.h.b16 %v119
    %v462 = vunpack.c.l.b16 %v120
    %v463 = vunpack.c.h.b16 %v120
    %v464 = vunpack.c.l.b16 %v121
    %v465 = vunpack.c.h.b16 %v121
    %v466 = vunpack.c.l.b16 %v122
    %v467 = vunpack.c.h.b16 %v122
    %v468 = vunpack.c.l.b16 %v123
    %v469 = vunpack.c.h.b16 %v123
    %v470 = vunpack.c.l.b16 %v124
    %v471 = vunpack.c.h.b16 %v124
    %v472 = vunpack.c.l.b16 %v125
    %v473 = vunpack.c.h.b16 %v125
    %v474 = vunpack.c.l.b16 %v126
    %v475 = vunpack.c.h.b16 %v126
    %v476 = vunpack.c.l.b16 %v127
    %v477 = vunpack.c.h.b16 %v127
    %v478 = vunpack.c.l.b16 %v128
    %v479 = vunpack.c.h.b16 %v128
    %v480 = vunpack.c.l.b16 %v129
    %v481 = vunpack.c.h.b16 %v129
    %v482 = vunpack.c.l.b16 %v130
    %v483 = vunpack.c.h.b16 %v130
    %v484 = vunpack.c.l.b16 %v131
    %v485 = vunpack.c.h.b16 %v131
    %v486 = vunpack.c.l.b16 %v132
    %v487 = vunpack.c.h.b16 %v132
    %v488 = vunpack.c.l.b16 %v133
    %v489 = vunpack.c.h.b16 %v133
    %v490 = vunpack.c.l.b16 %v134
    %v491 = vunpack.c.h.b16 %v134
    %v492 = vunpack.c.l.b16 %v135
    %v493 = vunpack.c.h.b16 %v135
    %v494 = vunpack.c.l.b16 %v136
    %v495 = vunpack.c.h.b16 %v136
    %v496 = vunpack.c.l.b16 %v137
    %v497 = vunpack.c.h.b16 %v137
    %v498 = vunpack.c.l.b16 %v138
    %v499 = vunpack.c.h.b16 %v138
    %v500 = vunpack.c.l.b16 %v139
    %v501 = vunpack.c.h.b16 %v139
    %v502 = vunpack.c.l.b16 %v140
    %v503 = vunpack.c.h.b16 %v140
    %v504 = vunpack.c.l.b16 %v141
    %v505 = vunpack.c.h.b16 %v141
    %v506 = vunpack.c.l.b16 %v142
    %v507 = vunpack.c.h.b16 %v142
    %v508 = vunpack.c.l.b16 %v143
    %v509 = vunpack.c.h.b16 %v143
    %v510 = vunpack.c.l.b16 %v144
    %v511 = vunpack.c.h.b16 %v144
    %v512 = vunpack.c.l.b16 %v145
    %v513 = vunpack.c.h.b16 %v145
    %v514 = vunpack.c.l.b16 %v146
    %v515 = vunpack.c.h.b16 %v146
    %v516 = vunpack.c.l.b16 %v147
    %v517 = vunpack.c.h.b16 %v147
    %v518 = vunpack.c.l.b16 %v148
    %v519 = vunpack.c.h.b16 %v148
    %v520 = vunpack.c.l.b16 %v149
    %v521 = vunpack.c.h.b16 %v149
    %v522 = vunpack.c.l.b16 %v150
    %v523 = vunpack.c.h.b16 %v150
    %v524 = vunpack.c.l.b16 %v151
    %v525 = vunpack.c.h.b16 %v151
    %v526 = vunpack.c.l.b16 %v152
    %v527 = vunpack.c.h.b16 %v152
    %v528 = vunpack.c.l.b16 %v153
    %v529 = vunpack.c.h.b16 %v153
    %v530 = vunpack.c.l.b16 %v154
    %v531 = vunpack.c.h.b16 %v154
    %v532 = vunpack.c.l.b16 %v155
    %v533 = vunpack.c.h.b16 %v155
    %v534 = vunpack.c.l.b16 %v156
    %v535 = vunpack.c.h.b16 %v156
    %v536 = vunpack.c.l.b16 %v157
    %v537 = vunpack.c.h.b16 %v157
    %v538 = vunpack.c.l.b16 %v158
    %v539 = vunpack.c.h.b16 %v158
    %v540 = vunpack.c.l.b16 %v159
    %v541 = vunpack.c.h.b16 %v159
    %v542 = vunpack.c.l.b16 %v160
    %v543 = vunpack.c.h.b16 %v160
    %v544 = vunpack.c.l.b16 %v161
    %v545 = vunpack.c.h.b16 %v161
    %v546 = vpack.c.b16 %v306, %v290
    %v547 = vpack.c.b16 %v307, %v291
    %v548 = vpack.c.b16 %v308, %v292
    %v549 = vpack.c.b16 %v309, %v293
    %v550 = vpack.c.b16 %v310, %v294
    %v551 = vpack.c.b16 %v311, %v295
    %v552 = vpack.c.b16 %v312, %v296
    %v553 = vpack.c.b16 %v313, %v297
    %v554 = vpack.c.b16 %v314, %v298
    %v555 = vpack.c.b16 %v315, %v299
    %v556 = vpack.c.b16 %v316, %v300
    %v557 = vpack.c.b16 %v317, %v301
    %v558 = vpack.c.b16 %v318, %v302
    %v559 = vpack.c.b16 %v319, %v303
    %v560 = vpack.c.b16 %v320, %v304
    %v561 = vpack.c.b16 %v321, %v305
    %v562 = vpack.c.b16 %v338, %v322
    %v563 = vpack.c.b16 %v339, %v323
    %v564 = vpack.c.b16 %v340, %v324
    %v565 = vpack.c.b16 %v341, %v325
    %v566 = vpack.c.b16 %v342, %v326
    %v567 = vpack.c.b16 %v343, %v327
    %v568 = vpack.c.b16 %v344, %v328
    %v569 = vpack.c.b16 %v345, %v329
    %v570 = vpack.c.b16 %v346, %v330
    %v571 = vpack.c.b16 %v347, %v331
    %v572 = vpack.c.b16 %v348, %v332
    %v573 = vpack.c.b16 %v349, %v333
    %v574 = vpack.c.b16 %v350, %v334
    %v575 = vpack.c.b16 %v351, %v335
    %v576 = vpack.c.b16 %v352, %v336
    %v577 = vpack.c.b16 %v353, %v337
    %v578 = vpack.c.b16 %v370, %v354
    %v579 = vpack.c.b16 %v371, %v355
    %v580 = vpack.c.b16 %v372, %v356
    %v581 = vpack.c.b16 %v373, %v357
    %v582 = vpack.c.b16 %v374, %v358
    %v583 = vpack.c.b16 %v375, %v359
    %v584 = vpack.c.b16 %v376, %v360
    %v585 = vpack.c.b16 %v377, %v361
    %v586 = vpack.c.b16 %v378, %v362
    %v587 = vpack.c.b16 %v379, %v363
    %v588 = vpack.c.b16 %v380, %v364
    %v589 = vpack.c.b16 %v381, %v365
    %v590 = vpack.c.b16 %v382, %v366
    %v591 = vpack.c.b16 %v383, %v367
    %v592 = vpack.c.b16 %v384, %v368
    %v593 = vpack.c.b16 %v385, %v369
    %v594 = vpack.c.b16 %v402, %v386
    %v595 = vpack.c.b16 %v403, %v387
    %v596 = vpack.c.b16 %v404, %v388
    %v597 = vpack.c.b16 %v405, %v389
    %v598 = vpack.c.b16 %v406, %v390
    %v599 = vpack.c.b16 %v407, %v391
    %v600 = vpack.c.b16 %v408, %v392
    %v601 = vpack.c.b16 %v409, %v393
    %v602 = vpack.c.b16 %v410, %v394
    %v603 = vpack.c.b16 %v411, %v395
    %v604 = vpack.c.b16 %v412, %v396
    %v605 = vpack.c.b16 %v413, %v397
    %v606 = vpack.c.b16 %v414, %v398
    %v607 = vpack.c.b16 %v415, %v399
    %v608 = vpack.c.b16 %v416, %v400
    %v609 = vpack.c.b16 %v417, %v401
    %v610 = vpack.c.b16 %v434, %v418
    %v611 = vpack.c.b16 %v435, %v419
    %v612 = vpack.c.b16 %v436, %v420
    %v613 = vpack.c.b16 %v437, %v421
    %v614 = vpack.c.b16 %v438, %v422
    %v615 = vpack.c.b16 %v439, %v423
    %v616 = vpack.c.b16 %v440, %v424
    %v617 = vpack.c.b16 %v441, %v425
    %v618 = vpack.c.b16 %v442, %v426
    %v619 = vpack.c.b16 %v443, %v427
    %v620 = vpack.c.b16 %v444, %v428
    %v621 = vpack.c.b16 %v445, %v429
    %v622 = vpack.c.b16 %v446, %v430
    %v623 = vpack.c.b16 %v447, %v431
    %v624 = vpack.c.b16 %v448, %v432
    %v625 = vpack.c.b16 %v449, %v433
    %v626 = vpack.c.b16 %v466, %v450
    %v627 = vpack.c.b16 %v467, %v451
    %v628 = vpack.c.b16 %v468, %v452
    %v629 = vpack.c.b16 %v469, %v453
    %v630 = vpack.c.b16 %v470, %v454
    %v631 = vpack.c.b16 %v471, %v455
    %v632 = vpack.c.b16 %v472, %v456
    %v633 = vpack.c.b16 %v473, %v457
    %v634 = vpack.c.b16 %v474, %v458
    %v635 = vpack.c.b16 %v475, %v459
    %v636 = vpack.c.b16 %v476, %v460
    %v637 = vpack.c.b16 %v477, %v461
    %v638 = vpack.c.b16 %v478, %v462
    %v639 = vpack.c.b16 %v479, %v463
    %v640 = vpack.c.b16 %v480, %v464
    %v641 = vpack.c.b16 %v481, %v465
    %v642 = vpack.c.b16 %v498, %v482
    %v643 = vpack.c.b16 %v499, %v483
    %v644 = vpack.c.b16 %v500, %v484
    %v645 = vpack.c.b16 %v501, %v485
    %v646 = vpack.c.b16 %v502, %v486
    %v647 = vpack.c.b16 %v503, %v487
    %v648 = vpack.c.b16 %v504, %v488
    %v649 = vpack.c.b16 %v505, %v489
    %v650 = vpack.c.b16 %v506, %v490
    %v651 = vpack.c.b16 %v507, %v491
    %v652 = vpack.c.b16 %v508, %v492
    %v653 = vpack.c.b16 %v509, %v493
    %v654 = vpack.c.b16 %v510, %v494
    %v655 = vpack.c.b16 %v511, %v495
    %v656 = vpack.c.b16 %v512, %v496
    %v657 = vpack.c.b16 %v513, %v497
    %v658 = vpack.c.b16 %v530, %v514
    %v659 = vpack.c.b16 %v531, %v515
    %v660 = vpack.c.b16 %v532, %v516
    %v661 = vpack.c.b16 %v533, %v517
    %v662 = vpack.c.b16 %v534, %v518
    %v663 = vpack.c.b16 %v535, %v519
    %v664 = vpack.c.b16 %v536, %v520
    %v665 = vpack.c.b16 %v537, %v521
    %v666 = vpack.c.b16 %v538, %v522
    %v667 = vpack.c.b16 %v539, %v523
    %v668 = vpack.c.b16 %v540, %v524
    %v669 = vpack.c.b16 %v541, %v525
    %v670 = vpack.c.b16 %v542, %v526
    %v671 = vpack.c.b16 %v543, %v527
    %v672 = vpack.c.b16 %v544, %v528
    %v673 = vpack.c.b16 %v545, %v529
    %802 = vmatprep.subr.bf16.mxu0 %v547
    %803 = vmatpush1.bf16.msra.mxu0 %v546
    %804 = vmatprep.subr.bf16.mxu0 %v563
    %805 = vmatpush1.bf16.msra.mxu0 %v562
    %806 = vmatprep.subr.bf16.mxu0 %v579
    %807 = vmatpush1.bf16.msra.mxu0 %v578
    %808 = vmatprep.subr.bf16.mxu0 %v595
    %809 = vmatpush1.bf16.msra.mxu0 %v594
    %810 = vmatprep.subr.bf16.mxu0 %v611
    %811 = vmatpush1.bf16.msra.mxu0 %v610
    %812 = vmatprep.subr.bf16.mxu0 %v627
    %813 = vmatpush1.bf16.msra.mxu0 %v626
    %814 = vmatprep.subr.bf16.mxu0 %v643
    %815 = vmatpush1.bf16.msra.mxu0 %v642
    %816 = vmatprep.subr.bf16.mxu0 %v659
    %817 = vmatpush1.bf16.msra.mxu0 %v658
    %818 = vmatprep.subr.bf16.mxu0 0
    %819 = vmatpush1.bf16.msra.mxu0 0
    %820 = vmatprep.subr.bf16.mxu0 0
    %821 = vmatpush1.bf16.msra.mxu0 0
    %822 = vmatprep.subr.bf16.mxu0 0
    %823 = vmatpush1.bf16.msra.mxu0 0
    %824 = vmatprep.subr.bf16.mxu0 0
    %825 = vmatpush1.bf16.msra.mxu0 0
    %826 = vmatprep.subr.bf16.mxu0 0
    %827 = vmatpush1.bf16.msra.mxu0 0
    %828 = vmatprep.subr.bf16.mxu0 0
    %829 = vmatpush1.bf16.msra.mxu0 0
    %830 = vmatprep.subr.bf16.mxu0 0
    %831 = vmatpush1.bf16.msra.mxu0 0
    %832 = vmatprep.subr.bf16.mxu0 0
    %833 = vmatpush1.bf16.msra.mxu0 0
    %834 = vmatprep.mubr.bf16.mxu0 0
    %835 = vmatmul.mubr.bf16.gmra.mrb[0].mxu0 %v33
    %v836 = vpop.f32.mrb[0].mxu0
    %v837 = vadd.f32 0.0, %v836
    %v838 = vpop.f32.mrb[0].mxu0
    %v839 = vadd.f32 0.0, %v838
    %v840 = vpop.f32.mrb[0].mxu0
    %v841 = vpop.f32.mrb[0].mxu0
    %842 = vdwg.mxu0
    %843 = vmatprep.subr.bf16.mxu0 %v549
    %844 = vmatpush1.bf16.msra.mxu0 %v548
    %845 = vmatprep.subr.bf16.mxu0 %v565
    %846 = vmatpush1.bf16.msra.mxu0 %v564
    %847 = vmatprep.subr.bf16.mxu0 %v581
    %848 = vmatpush1.bf16.msra.mxu0 %v580
    %849 = vmatprep.subr.bf16.mxu0 %v597
    %850 = vmatpush1.bf16.msra.mxu0 %v596
    %851 = vmatprep.subr.bf16.mxu0 %v613
    %852 = vmatpush1.bf16.msra.mxu0 %v612
    %853 = vmatprep.subr.bf16.mxu0 %v629
    %854 = vmatpush1.bf16.msra.mxu0 %v628
    %855 = vmatprep.subr.bf16.mxu0 %v645
    %856 = vmatpush1.bf16.msra.mxu0 %v644
    %857 = vmatprep.subr.bf16.mxu0 %v661
    %858 = vmatpush1.bf16.msra.mxu0 %v660
    %859 = vmatprep.subr.bf16.mxu0 0
    %860 = vmatpush1.bf16.msra.mxu0 0
    %861 = vmatprep.subr.bf16.mxu0 0
    %862 = vmatpush1.bf16.msra.mxu0 0
    %863 = vmatprep.subr.bf16.mxu0 0
    %864 = vmatpush1.bf16.msra.mxu0 0
    %865 = vmatprep.subr.bf16.mxu0 0
    %866 = vmatpush1.bf16.msra.mxu0 0
    %867 = vmatprep.subr.bf16.mxu0 0
    %868 = vmatpush1.bf16.msra.mxu0 0
    %869 = vmatprep.subr.bf16.mxu0 0
    %870 = vmatpush1.bf16.msra.mxu0 0
    %871 = vmatprep.subr.bf16.mxu0 0
    %872 = vmatpush1.bf16.msra.mxu0 0
    %873 = vmatprep.subr.bf16.mxu0 0
    %874 = vmatpush1.bf16.msra.mxu0 0
    %875 = vmatprep.mubr.bf16.mxu0 0
    %876 = vmatmul.mubr.bf16.gmra.mrb[0].mxu0 %v33
    %v877 = vpop.f32.mrb[0].mxu0
    %v878 = vadd.f32 0.0, %v877
    %v879 = vpop.f32.mrb[0].mxu0
    %v880 = vadd.f32 0.0, %v879
    %v881 = vpop.f32.mrb[0].mxu0
    %v882 = vpop.f32.mrb[0].mxu0
    %883 = vdwg.mxu0
    %884 = vmatprep.subr.bf16.mxu0 %v551
    %885 = vmatpush1.bf16.msra.mxu0 %v550
    %886 = vmatprep.subr.bf16.mxu0 %v567
    %887 = vmatpush1.bf16.msra.mxu0 %v566
    %888 = vmatprep.subr.bf16.mxu0 %v583
    %889 = vmatpush1.bf16.msra.mxu0 %v582
    %890 = vmatprep.subr.bf16.mxu0 %v599
    %891 = vmatpush1.bf16.msra.mxu0 %v598
    %892 = vmatprep.subr.bf16.mxu0 %v615
    %893 = vmatpush1.bf16.msra.mxu0 %v614
    %894 = vmatprep.subr.bf16.mxu0 %v631
    %895 = vmatpush1.bf16.msra.mxu0 %v630
    %896 = vmatprep.subr.bf16.mxu0 %v647
    %897 = vmatpush1.bf16.msra.mxu0 %v646
    %898 = vmatprep.subr.bf16.mxu0 %v663
    %899 = vmatpush1.bf16.msra.mxu0 %v662
    %900 = vmatprep.subr.bf16.mxu0 0
    %901 = vmatpush1.bf16.msra.mxu0 0
    %902 = vmatprep.subr.bf16.mxu0 0
    %903 = vmatpush1.bf16.msra.mxu0 0
    %904 = vmatprep.subr.bf16.mxu0 0
    %905 = vmatpush1.bf16.msra.mxu0 0
    %906 = vmatprep.subr.bf16.mxu0 0
    %907 = vmatpush1.bf16.msra.mxu0 0
    %908 = vmatprep.subr.bf16.mxu0 0
    %909 = vmatpush1.bf16.msra.mxu0 0
    %910 = vmatprep.subr.bf16.mxu0 0
    %911 = vmatpush1.bf16.msra.mxu0 0
    %912 = vmatprep.subr.bf16.mxu0 0
    %913 = vmatpush1.bf16.msra.mxu0 0
    %914 = vmatprep.subr.bf16.mxu0 0
    %915 = vmatpush1.bf16.msra.mxu0 0
    %916 = vmatprep.mubr.bf16.mxu0 0
    %917 = vmatmul.mubr.bf16.gmra.mrb[0].mxu0 %v33
    %v918 = vpop.f32.mrb[0].mxu0
    %v919 = vadd.f32 0.0, %v918
    %v920 = vpop.f32.mrb[0].mxu0
    %v921 = vadd.f32 0.0, %v920
    %v922 = vpop.f32.mrb[0].mxu0
    %v923 = vpop.f32.mrb[0].mxu0
    %924 = vdwg.mxu0
    %925 = vmatprep.subr.bf16.mxu0 %v553
    %926 = vmatpush1.bf16.msra.mxu0 %v552
    %927 = vmatprep.subr.bf16.mxu0 %v569
    %928 = vmatpush1.bf16.msra.mxu0 %v568
    %929 = vmatprep.subr.bf16.mxu0 %v585
    %930 = vmatpush1.bf16.msra.mxu0 %v584
    %931 = vmatprep.subr.bf16.mxu0 %v601
    %932 = vmatpush1.bf16.msra.mxu0 %v600
    %933 = vmatprep.subr.bf16.mxu0 %v617
    %934 = vmatpush1.bf16.msra.mxu0 %v616
    %935 = vmatprep.subr.bf16.mxu0 %v633
    %936 = vmatpush1.bf16.msra.mxu0 %v632
    %937 = vmatprep.subr.bf16.mxu0 %v649
    %938 = vmatpush1.bf16.msra.mxu0 %v648
    %939 = vmatprep.subr.bf16.mxu0 %v665
    %940 = vmatpush1.bf16.msra.mxu0 %v664
    %941 = vmatprep.subr.bf16.mxu0 0
    %942 = vmatpush1.bf16.msra.mxu0 0
    %943 = vmatprep.subr.bf16.mxu0 0
    %944 = vmatpush1.bf16.msra.mxu0 0
    %945 = vmatprep.subr.bf16.mxu0 0
    %946 = vmatpush1.bf16.msra.mxu0 0
    %947 = vmatprep.subr.bf16.mxu0 0
    %948 = vmatpush1.bf16.msra.mxu0 0
    %949 = vmatprep.subr.bf16.mxu0 0
    %950 = vmatpush1.bf16.msra.mxu0 0
    %951 = vmatprep.subr.bf16.mxu0 0
    %952 = vmatpush1.bf16.msra.mxu0 0
    %953 = vmatprep.subr.bf16.mxu0 0
    %954 = vmatpush1.bf16.msra.mxu0 0
    %955 = vmatprep.subr.bf16.mxu0 0
    %956 = vmatpush1.bf16.msra.mxu0 0
    %957 = vmatprep.mubr.bf16.mxu0 0
    %958 = vmatmul.mubr.bf16.gmra.mrb[0].mxu0 %v33
    %v959 = vpop.f32.mrb[0].mxu0
    %v960 = vadd.f32 0.0, %v959
    %v961 = vpop.f32.mrb[0].mxu0
    %v962 = vadd.f32 0.0, %v961
    %v963 = vpop.f32.mrb[0].mxu0
    %v964 = vpop.f32.mrb[0].mxu0
    %965 = vdwg.mxu0
    %966 = vmatprep.subr.bf16.mxu0 %v555
    %967 = vmatpush1.bf16.msra.mxu0 %v554
    %968 = vmatprep.subr.bf16.mxu0 %v571
    %969 = vmatpush1.bf16.msra.mxu0 %v570
    %970 = vmatprep.subr.bf16.mxu0 %v587
    %971 = vmatpush1.bf16.msra.mxu0 %v586
    %972 = vmatprep.subr.bf16.mxu0 %v603
    %973 = vmatpush1.bf16.msra.mxu0 %v602
    %974 = vmatprep.subr.bf16.mxu0 %v619
    %975 = vmatpush1.bf16.msra.mxu0 %v618
    %976 = vmatprep.subr.bf16.mxu0 %v635
    %977 = vmatpush1.bf16.msra.mxu0 %v634
    %978 = vmatprep.subr.bf16.mxu0 %v651
    %979 = vmatpush1.bf16.msra.mxu0 %v650
    %980 = vmatprep.subr.bf16.mxu0 %v667
    %981 = vmatpush1.bf16.msra.mxu0 %v666
    %982 = vmatprep.subr.bf16.mxu0 0
    %983 = vmatpush1.bf16.msra.mxu0 0
    %984 = vmatprep.subr.bf16.mxu0 0
    %985 = vmatpush1.bf16.msra.mxu0 0
    %986 = vmatprep.subr.bf16.mxu0 0
    %987 = vmatpush1.bf16.msra.mxu0 0
    %988 = vmatprep.subr.bf16.mxu0 0
    %989 = vmatpush1.bf16.msra.mxu0 0
    %990 = vmatprep.subr.bf16.mxu0 0
    %991 = vmatpush1.bf16.msra.mxu0 0
    %992 = vmatprep.subr.bf16.mxu0 0
    %993 = vmatpush1.bf16.msra.mxu0 0
    %994 = vmatprep.subr.bf16.mxu0 0
    %995 = vmatpush1.bf16.msra.mxu0 0
    %996 = vmatprep.subr.bf16.mxu0 0
    %997 = vmatpush1.bf16.msra.mxu0 0
    %998 = vmatprep.mubr.bf16.mxu0 0
    %999 = vmatmul.mubr.bf16.gmra.mrb[0].mxu0 %v33
    %v1000 = vpop.f32.mrb[0].mxu0
    %v1001 = vadd.f32 0.0, %v1000
    %v1002 = vpop.f32.mrb[0].mxu0
    %v1003 = vadd.f32 0.0, %v1002
    %v1004 = vpop.f32.mrb[0].mxu0
    %v1005 = vpop.f32.mrb[0].mxu0
    %1006 = vdwg.mxu0
    %1007 = vmatprep.subr.bf16.mxu0 %v557
    %1008 = vmatpush1.bf16.msra.mxu0 %v556
    %1009 = vmatprep.subr.bf16.mxu0 %v573
    %1010 = vmatpush1.bf16.msra.mxu0 %v572
    %1011 = vmatprep.subr.bf16.mxu0 %v589
    %1012 = vmatpush1.bf16.msra.mxu0 %v588
    %1013 = vmatprep.subr.bf16.mxu0 %v605
    %1014 = vmatpush1.bf16.msra.mxu0 %v604
    %1015 = vmatprep.subr.bf16.mxu0 %v621
    %1016 = vmatpush1.bf16.msra.mxu0 %v620
    %1017 = vmatprep.subr.bf16.mxu0 %v637
    %1018 = vmatpush1.bf16.msra.mxu0 %v636
    %1019 = vmatprep.subr.bf16.mxu0 %v653
    %1020 = vmatpush1.bf16.msra.mxu0 %v652
    %1021 = vmatprep.subr.bf16.mxu0 %v669
    %1022 = vmatpush1.bf16.msra.mxu0 %v668
    %1023 = vmatprep.subr.bf16.mxu0 0
    %1024 = vmatpush1.bf16.msra.mxu0 0
    %1025 = vmatprep.subr.bf16.mxu0 0
    %1026 = vmatpush1.bf16.msra.mxu0 0
    %1027 = vmatprep.subr.bf16.mxu0 0
    %1028 = vmatpush1.bf16.msra.mxu0 0
    %1029 = vmatprep.subr.bf16.mxu0 0
    %1030 = vmatpush1.bf16.msra.mxu0 0
    %1031 = vmatprep.subr.bf16.mxu0 0
    %1032 = vmatpush1.bf16.msra.mxu0 0
    %1033 = vmatprep.subr.bf16.mxu0 0
    %1034 = vmatpush1.bf16.msra.mxu0 0
    %1035 = vmatprep.subr.bf16.mxu0 0
    %1036 = vmatpush1.bf16.msra.mxu0 0
    %1037 = vmatprep.subr.bf16.mxu0 0
    %1038 = vmatpush1.bf16.msra.mxu0 0
    %1039 = vmatprep.mubr.bf16.mxu0 0
    %1040 = vmatmul.mubr.bf16.gmra.mrb[0].mxu0 %v33
    %v1041 = vpop.f32.mrb[0].mxu0
    %v1042 = vadd.f32 0.0, %v1041
    %v1043 = vpop.f32.mrb[0].mxu0
    %v1044 = vadd.f32 0.0, %v1043
    %v1045 = vpop.f32.mrb[0].mxu0
    %v1046 = vpop.f32.mrb[0].mxu0
    %1047 = vdwg.mxu0
    %1048 = vmatprep.subr.bf16.mxu0 %v559
    %1049 = vmatpush1.bf16.msra.mxu0 %v558
    %1050 = vmatprep.subr.bf16.mxu0 %v575
    %1051 = vmatpush1.bf16.msra.mxu0 %v574
    %1052 = vmatprep.subr.bf16.mxu0 %v591
    %1053 = vmatpush1.bf16.msra.mxu0 %v590
    %1054 = vmatprep.subr.bf16.mxu0 %v607
    %1055 = vmatpush1.bf16.msra.mxu0 %v606
    %1056 = vmatprep.subr.bf16.mxu0 %v623
    %1057 = vmatpush1.bf16.msra.mxu0 %v622
    %1058 = vmatprep.subr.bf16.mxu0 %v639
    %1059 = vmatpush1.bf16.msra.mxu0 %v638
    %1060 = vmatprep.subr.bf16.mxu0 %v655
    %1061 = vmatpush1.bf16.msra.mxu0 %v654
    %1062 = vmatprep.subr.bf16.mxu0 %v671
    %1063 = vmatpush1.bf16.msra.mxu0 %v670
    %1064 = vmatprep.subr.bf16.mxu0 0
    %1065 = vmatpush1.bf16.msra.mxu0 0
    %1066 = vmatprep.subr.bf16.mxu0 0
    %1067 = vmatpush1.bf16.msra.mxu0 0
    %1068 = vmatprep.subr.bf16.mxu0 0
    %1069 = vmatpush1.bf16.msra.mxu0 0
    %1070 = vmatprep.subr.bf16.mxu0 0
    %1071 = vmatpush1.bf16.msra.mxu0 0
    %1072 = vmatprep.subr.bf16.mxu0 0
    %1073 = vmatpush1.bf16.msra.mxu0 0
    %1074 = vmatprep.subr.bf16.mxu0 0
    %1075 = vmatpush1.bf16.msra.mxu0 0
    %1076 = vmatprep.subr.bf16.mxu0 0
    %1077 = vmatpush1.bf16.msra.mxu0 0
    %1078 = vmatprep.subr.bf16.mxu0 0
    %1079 = vmatpush1.bf16.msra.mxu0 0
    %1080 = vmatprep.mubr.bf16.mxu0 0
    %1081 = vmatmul.mubr.bf16.gmra.mrb[0].mxu0 %v33
    %v1082 = vpop.f32.mrb[0].mxu0
    %v1083 = vadd.f32 0.0, %v1082
    %v1084 = vpop.f32.mrb[0].mxu0
    %v1085 = vadd.f32 0.0, %v1084
    %v1086 = vpop.f32.mrb[0].mxu0
    %v1087 = vpop.f32.mrb[0].mxu0
    %1088 = vdwg.mxu0
    %1089 = vmatprep.subr.bf16.mxu0 %v561
    %1090 = vmatpush1.bf16.msra.mxu0 %v560
    %1091 = vmatprep.subr.bf16.mxu0 %v577
    %1092 = vmatpush1.bf16.msra.mxu0 %v576
    %1093 = vmatprep.subr.bf16.mxu0 %v593
    %1094 = vmatpush1.bf16.msra.mxu0 %v592
    %1095 = vmatprep.subr.bf16.mxu0 %v609
    %1096 = vmatpush1.bf16.msra.mxu0 %v608
    %1097 = vmatprep.subr.bf16.mxu0 %v625
    %1098 = vmatpush1.bf16.msra.mxu0 %v624
    %1099 = vmatprep.subr.bf16.mxu0 %v641
    %1100 = vmatpush1.bf16.msra.mxu0 %v640
    %1101 = vmatprep.subr.bf16.mxu0 %v657
    %1102 = vmatpush1.bf16.msra.mxu0 %v656
    %1103 = vmatprep.subr.bf16.mxu0 %v673
    %1104 = vmatpush1.bf16.msra.mxu0 %v672
    %1105 = vmatprep.subr.bf16.mxu0 0
    %1106 = vmatpush1.bf16.msra.mxu0 0
    %1107 = vmatprep.subr.bf16.mxu0 0
    %1108 = vmatpush1.bf16.msra.mxu0 0
    %1109 = vmatprep.subr.bf16.mxu0 0
    %1110 = vmatpush1.bf16.msra.mxu0 0
    %1111 = vmatprep.subr.bf16.mxu0 0
    %1112 = vmatpush1.bf16.msra.mxu0 0
    %1113 = vmatprep.subr.bf16.mxu0 0
    %1114 = vmatpush1.bf16.msra.mxu0 0
    %1115 = vmatprep.subr.bf16.mxu0 0
    %1116 = vmatpush1.bf16.msra.mxu0 0
    %1117 = vmatprep.subr.bf16.mxu0 0
    %1118 = vmatpush1.bf16.msra.mxu0 0
    %1119 = vmatprep.subr.bf16.mxu0 0
    %1120 = vmatpush1.bf16.msra.mxu0 0
    %1121 = vmatprep.mubr.bf16.mxu0 0
    %1122 = vmatmul.mubr.bf16.gmra.mrb[0].mxu0 %v33
    %v1123 = vpop.f32.mrb[0].mxu0
    %v1124 = vadd.f32 0.0, %v1123
    %v1125 = vpop.f32.mrb[0].mxu0
    %v1126 = vadd.f32 0.0, %v1125
    %v1127 = vpop.f32.mrb[0].mxu0
    %v1128 = vpop.f32.mrb[0].mxu0
    %1129 = vdwg.mxu0
    %v1130 = vadd.f32 %v837, %v839
    %v1131 = vadd.f32 %v1130, %v878
    %v1132 = vadd.f32 %v1131, %v880
    %v1133 = vadd.f32 %v1132, %v919
    %v1134 = vadd.f32 %v1133, %v921
    %v1135 = vadd.f32 %v1134, %v960
    %v1136 = vadd.f32 %v1135, %v962
    %v1137 = vadd.f32 %v1136, %v1001
    %v1138 = vadd.f32 %v1137, %v1003
    %v1139 = vadd.f32 %v1138, %v1042
    %v1140 = vadd.f32 %v1139, %v1044
    %v1141 = vadd.f32 %v1140, %v1083
    %v1142 = vadd.f32 %v1141, %v1085
    %v1143 = vadd.f32 %v1142, %v1124
    %v1144 = vadd.f32 %v1143, %v1126
    %1145 = vadd.xlane.f32.xlu0 %v1144
    %v1146 = vpop.xlane.xlu0 %1145
    %v1147 = vrcp.pop 2048.0
    %v1148 = vmul.f32 %v1146, %v1147
    %v1149 = vsub.f32 %v837, %v1148
    %v1150 = vsub.f32 %v839, %v1148
    %v1151 = vsub.f32 %v878, %v1148
    %v1152 = vsub.f32 %v880, %v1148
    %v1153 = vsub.f32 %v919, %v1148
    %v1154 = vsub.f32 %v921, %v1148
    %v1155 = vsub.f32 %v960, %v1148
    %v1156 = vsub.f32 %v962, %v1148
    %v1157 = vsub.f32 %v1001, %v1148
    %v1158 = vsub.f32 %v1003, %v1148
    %v1159 = vsub.f32 %v1042, %v1148
    %v1160 = vsub.f32 %v1044, %v1148
    %v1161 = vsub.f32 %v1083, %v1148
    %v1162 = vsub.f32 %v1085, %v1148
    %v1163 = vsub.f32 %v1124, %v1148
    %v1164 = vsub.f32 %v1126, %v1148
    %v1165 = vmul.f32 %v1149, %v1149
    %v1166 = vmul.f32 %v1150, %v1150
    %v1167 = vmul.f32 %v1151, %v1151
    %v1168 = vmul.f32 %v1152, %v1152
    %v1169 = vmul.f32 %v1153, %v1153
    %v1170 = vmul.f32 %v1154, %v1154
    %v1171 = vmul.f32 %v1155, %v1155
    %v1172 = vmul.f32 %v1156, %v1156
    %v1173 = vmul.f32 %v1157, %v1157
    %v1174 = vmul.f32 %v1158, %v1158
    %v1175 = vmul.f32 %v1159, %v1159
    %v1176 = vmul.f32 %v1160, %v1160
    %v1177 = vmul.f32 %v1161, %v1161
    %v1178 = vmul.f32 %v1162, %v1162
    %v1179 = vmul.f32 %v1163, %v1163
    %v1180 = vmul.f32 %v1164, %v1164
    %v1181 = vadd.f32 %v1165, %v1166
    %v1182 = vadd.f32 %v1181, %v1167
    %v1183 = vadd.f32 %v1182, %v1168
    %v1184 = vadd.f32 %v1183, %v1169
    %v1185 = vadd.f32 %v1184, %v1170
    %v1186 = vadd.f32 %v1185, %v1171
    %v1187 = vadd.f32 %v1186, %v1172
    %v1188 = vadd.f32 %v1187, %v1173
    %v1189 = vadd.f32 %v1188, %v1174
    %v1190 = vadd.f32 %v1189, %v1175
    %v1191 = vadd.f32 %v1190, %v1176
    %v1192 = vadd.f32 %v1191, %v1177
    %v1193 = vadd.f32 %v1192, %v1178
    %v1194 = vadd.f32 %v1193, %v1179
    %v1195 = vadd.f32 %v1194, %v1180
    %1196 = vadd.xlane.f32.xlu0 %v1195
    %v1197 = vpop.xlane.xlu0 %1196
    %v1198 = vmul.f32 %v1197, %v1147
    %v1199 = vld [vmem:[%s2] sm:$0xff]
    %v1200 = vadd.f32 %v1198, 1e-05
    %v1201 = vrsqrt.pop %v1200
    %v1202 = vmul.f32 %v1149, %v1201
    %v1203 = vmul.f32 %v1150, %v1201
    %v1204 = vmul.f32 %v1151, %v1201
    %v1205 = vmul.f32 %v1152, %v1201
    %v1206 = vmul.f32 %v1153, %v1201
    %v1207 = vmul.f32 %v1154, %v1201
    %v1208 = vmul.f32 %v1155, %v1201
    %v1209 = vmul.f32 %v1156, %v1201
    %v1210 = vmul.f32 %v1157, %v1201
    %v1211 = vmul.f32 %v1158, %v1201
    %v1212 = vmul.f32 %v1159, %v1201
    %v1213 = vmul.f32 %v1160, %v1201
    %v1214 = vmul.f32 %v1161, %v1201
    %v1215 = vmul.f32 %v1162, %v1201
    %v1216 = vmul.f32 %v1163, %v1201
    %v1217 = vmul.f32 %v1164, %v1201
    %1219 = vset.pattern.permute.xlu0 0
    %1220 = vperm.xlu0 %1219, %v1199
    %v1221 = vpop.permute.xlu0 %1220
    %v1223 = vmul.f32 %v1202, %v1221
    %v1224 = vmul.f32 %v1203, %v1221
    %v1225 = vmul.f32 %v1204, %v1221
    %v1226 = vmul.f32 %v1205, %v1221
    %v1227 = vmul.f32 %v1206, %v1221
    %v1228 = vmul.f32 %v1207, %v1221
    %v1229 = vmul.f32 %v1208, %v1221
    %v1230 = vmul.f32 %v1209, %v1221
    %v1231 = vmul.f32 %v1210, %v1221
    %v1232 = vmul.f32 %v1211, %v1221
    %v1233 = vmul.f32 %v1212, %v1221
    %v1234 = vmul.f32 %v1213, %v1221
    %v1235 = vmul.f32 %v1214, %v1221
    %v1236 = vmul.f32 %v1215, %v1221
    %v1237 = vmul.f32 %v1216, %v1221
    %v1238 = vmul.f32 %v1217, %v1221
    %1239 = vset.pattern.permute.xlu0 1
    %1240 = vperm.xlu0 %1239, %v1199
    %v1241 = vpop.permute.xlu0 %1240
    %v1243 = vadd.f32 %v1223, %v1241
    %v1244 = vadd.f32 %v1224, %v1241
    %v1245 = vadd.f32 %v1225, %v1241
    %v1246 = vadd.f32 %v1226, %v1241
    %v1247 = vadd.f32 %v1227, %v1241
    %v1248 = vadd.f32 %v1228, %v1241
    %v1249 = vadd.f32 %v1229, %v1241
    %v1250 = vadd.f32 %v1230, %v1241
    %v1251 = vadd.f32 %v1231, %v1241
    %v1252 = vadd.f32 %v1232, %v1241
    %v1253 = vadd.f32 %v1233, %v1241
    %v1254 = vadd.f32 %v1234, %v1241
    %v1255 = vadd.f32 %v1235, %v1241
    %v1256 = vadd.f32 %v1236, %v1241
    %v1257 = vadd.f32 %v1237, %v1241
    %v1258 = vadd.f32 %v1238, %v1241
    %v1259 = vmax.f32 %v1243, 0.0
    %v1260 = vmax.f32 %v1244, 0.0
    %v1261 = vmax.f32 %v1245, 0.0
    %v1262 = vmax.f32 %v1246, 0.0
    %v1263 = vmax.f32 %v1247, 0.0
    %v1264 = vmax.f32 %v1248, 0.0
    %v1265 = vmax.f32 %v1249, 0.0
    %v1266 = vmax.f32 %v1250, 0.0
    %v1267 = vmax.f32 %v1251, 0.0
    %v1268 = vmax.f32 %v1252, 0.0
    %v1269 = vmax.f32 %v1253, 0.0
    %v1270 = vmax.f32 %v1254, 0.0
    %v1271 = vmax.f32 %v1255, 0.0
    %v1272 = vmax.f32 %v1256, 0.0
    %v1273 = vmax.f32 %v1257, 0.0
    %v1274 = vmax.f32 %v1258, 0.0
    %v1275 = vmax.f32 %v1259, %v1261
    %v1276 = vmax.f32 %v1260, %v1262
    %v1277 = vmax.f32 %v1275, %v1263
    %v1278 = vmax.f32 %v1276, %v1264
    %v1279 = vmax.f32 %v1277, %v1265
    %v1280 = vmax.f32 %v1278, %v1266
    %v1281 = vmax.f32 %v1279, %v1267
    %v1282 = vmax.f32 %v1280, %v1268
    %v1283 = vmax.f32 %v1281, %v1269
    %v1284 = vmax.f32 %v1282, %v1270
    %v1285 = vmax.f32 %v1283, %v1271
    %v1286 = vmax.f32 %v1284, %v1272
    %v1287 = vmax.f32 %v1285, %v1273
    %v1288 = vmax.f32 %v1286, %v1274
    %v1289 = vld [vmem:[%s3] sm:$0xff]
    %vm1290 = vcmask 64512
    %v1292 = vsel %vm1290, %v1289, 0
    %1294 = vmatprep.subr.mxu0 %v1288
    %1295 = vmatpush1.msra.mxu0 %v1287
    %1296 = vmatprep.subr.mxu0 0.0
    %1297 = vmatpush1.msra.mxu0 0.0
    %1298 = vmatprep.subr.mxu0 0.0
    %1299 = vmatpush1.msra.mxu0 0.0
    %1300 = vmatprep.subr.mxu0 0.0
    %1301 = vmatpush1.msra.mxu0 0.0
    %1302 = vmatprep.subr.mxu0 0.0
    %1303 = vmatpush1.msra.mxu0 0.0
    %1304 = vmatprep.subr.mxu0 0.0
    %1305 = vmatpush1.msra.mxu0 0.0
    %1306 = vmatprep.subr.mxu0 0.0
    %1307 = vmatpush1.msra.mxu0 0.0
    %1308 = vmatprep.subr.mxu0 0.0
    %1309 = vmatpush1.msra.mxu0 0.0
    %1310 = vmatprep.subr.mxu0 0.0
    %1311 = vmatpush1.msra.mxu0 0.0
    %1312 = vmatprep.subr.mxu0 0.0
    %1313 = vmatpush1.msra.mxu0 0.0
    %1314 = vmatprep.subr.mxu0 0.0
    %1315 = vmatpush1.msra.mxu0 0.0
    %1316 = vmatprep.subr.mxu0 0.0
    %1317 = vmatpush1.msra.mxu0 0.0
    %1318 = vmatprep.subr.mxu0 0.0
    %1319 = vmatpush1.msra.mxu0 0.0
    %1320 = vmatprep.subr.mxu0 0.0
    %1321 = vmatpush1.msra.mxu0 0.0
    %1322 = vmatprep.subr.mxu0 0.0
    %1323 = vmatpush1.msra.mxu0 0.0
    %1324 = vmatprep.subr.mxu0 0.0
    %1325 = vmatpush1.msra.mxu0 0.0
    %1326 = vmatprep.subr.mxu0 0.0
    %1327 = vmatpush1.msra.mxu0 0.0
    %1328 = vmatprep.subr.mxu0 0.0
    %1329 = vmatpush1.msra.mxu0 0.0
    %1330 = vmatprep.subr.mxu0 0.0
    %1331 = vmatpush1.msra.mxu0 0.0
    %1332 = vmatprep.subr.mxu0 0.0
    %1333 = vmatpush1.msra.mxu0 0.0
    %1334 = vmatprep.subr.mxu0 0.0
    %1335 = vmatpush1.msra.mxu0 0.0
    %1336 = vmatprep.subr.mxu0 0.0
    %1337 = vmatpush1.msra.mxu0 0.0
    %1338 = vmatprep.subr.mxu0 0.0
    %1339 = vmatpush1.msra.mxu0 0.0
    %1340 = vmatprep.subr.mxu0 0.0
    %1341 = vmatpush1.msra.mxu0 0.0
    %1342 = vmatprep.subr.mxu0 0.0
    %1343 = vmatpush1.msra.mxu0 0.0
    %1344 = vmatprep.subr.mxu0 0.0
    %1345 = vmatpush1.msra.mxu0 0.0
    %1346 = vmatprep.subr.mxu0 0.0
    %1347 = vmatpush1.msra.mxu0 0.0
    %1348 = vmatprep.subr.mxu0 0.0
    %1349 = vmatpush1.msra.mxu0 0.0
    %1350 = vmatprep.subr.mxu0 0.0
    %1351 = vmatpush1.msra.mxu0 0.0
    %1352 = vmatprep.subr.mxu0 0.0
    %1353 = vmatpush1.msra.mxu0 0.0
    %1354 = vmatprep.subr.mxu0 0.0
    %1355 = vmatpush1.msra.mxu0 0.0
    %1356 = vmatprep.subr.mxu0 0.0
    %1357 = vmatpush1.msra.mxu0 0.0
    %1358 = vmatprep.mubr.f32.mxu0 0.0
    %1359 = vmatmul.mubr.f32.gmra.mrb[0].mxu0 %v1292
    %v1360 = vpop.f32.mrb[0].mxu0
    %v1361 = vadd.f32 0.0, %v1360
    %v1362 = vpop.f32.mrb[0].mxu0
    %v1363 = vadd.f32 0.0, %v1362
    %1364 = vdwg.mxu0
    %v1365 = vadd.f32 %v1287, %v1361
    %v1366 = vadd.f32 %v1288, %v1363
    %1367 = vset.pattern.permute.xlu0 2
    %1368 = vperm.xlu0 %1367, %v1199
    %v1369 = vpop.permute.xlu0 %1368
    %v1371 = vadd.f32 %v1365, %v1369
    %v1372 = vadd.f32 %v1366, %v1369
    %v1373 = vmax.f32 %v1371, 0.0
    %v1374 = vmax.f32 %v1372, 0.0
    %1375 = vst [vmem:[#allocation5] sm:$0xff] %v1373
    %1376 = vst [vmem:[#allocation5 + $0x8] sm:$0xff] %v1374
    // Predicated region
    $region22: #{tpu_custom_call.1} parent=1 // pred_check
      _
    $region23: #{tpu_custom_call.1} parent=1 // pred_check_branch
      %1378 = sbr.rel (0) target = $region25
    $region24: #{tpu_custom_call.1} parent=1 // pred_region
      %s1380 = ssub.s32 256, 256
      %1381 = vsyncadd [#allocation4], %s1380
      %s1383 = sshll.u32 [#allocation5], 4
      %s1384 = int_to_ptr.vmem [resolvable:$true] %s1383
      %1386 = dma.vmem_to_hbm [thread:$0]  %s1384, 256, %s4, [#allocation4]
    $region25: #{tpu_custom_call.1} parent=1 // pred_fallthru
      _
    // Predicated region
    $region26: #{tpu_custom_call.1} parent=1 // pred_check
      _
    $region27: #{tpu_custom_call.1} parent=1 // pred_check_branch
      %1388 = sbr.rel (0) target = $region29
    $region28: #{tpu_custom_call.1} parent=1 // pred_region
      %1389 = dma.done [#allocation4], 256
    $region29: #{tpu_custom_call.1} parent=1 // pred_fallthru
      _
    %1390 = vsyncpa [#allocation3], 1
    %1391 = vsyncpa [#allocation4], 1

</llo_original>
